<compile_context>
chip_gen: v5e
topology: v5e:2x2
jax: 0.10.0
libtpu: 0.0.40
codegen_flags: <defaults>
</compile_context>

<pallas_src>
import functools

import jax
import jax.numpy as jnp
from jax.experimental import pallas as pl
from jax.experimental.pallas import tpu as pltpu

_LANE = 128
_ROW_PACK = 16      # bf16 packs 16 rows per vreg; also a multiple of 8 (f32)


def _round_up(n, m):
    return ((n + m - 1) // m) * m


def _cdiv(a, b):
    return (a + b - 1) // b


# ----------------------------------------------------------------------------
# Kernel
# ----------------------------------------------------------------------------
def _make_res_block_kernel(n_res: int):
    """Kernel for a Res_Block with `n_res` residual sub-blocks.

    refs layout: [x, w1, b1, (wa, ba, wb, bb) * n_res, w2, b2, out]
    Weights are (in, out) bf16; biases are (1, out) f32.  x arrives in its
    original dtype and is cast to bf16 on the VPU inside the kernel (hidden
    under the MXU work).
    """

    def kernel(*refs):
        x_ref = refs[0]
        w1_ref, b1_ref = refs[1], refs[2]
        idx = 3
        res_refs = []
        for _ in range(n_res):
            res_refs.append(refs[idx:idx + 4])
            idx += 4
        w2_ref, b2_ref = refs[idx], refs[idx + 1]
        o_ref = refs[idx + 2]

        # FC1: bf16 x bf16 -> f32 accumulation on the MXU; bias add in f32.
        x = x_ref[...].astype(w1_ref.dtype)
        h = jnp.dot(x, w1_ref[...],
                    preferred_element_type=jnp.float32) + b1_ref[...]

        # Residual sub-blocks: h = ReLU(FC(ReLU(FC(h))) + h); VPU work in f32.
        for wa_ref, ba_ref, wb_ref, bb_ref in res_refs:
            t = jnp.dot(h.astype(wa_ref.dtype), wa_ref[...],
                        preferred_element_type=jnp.float32) + ba_ref[...]
            t = jnp.maximum(t, 0.0)                       # inner ReLU ('RL')
            t = jnp.dot(t.astype(wb_ref.dtype), wb_ref[...],
                        preferred_element_type=jnp.float32) + bb_ref[...]
            h = jnp.maximum(t + h, 0.0)                   # outer ReLU on residual sum

        # FC2 (final Linear, bias=True); lane-dense store (out padded to 128).
        o_ref[...] = (jnp.dot(h.astype(w2_ref.dtype), w2_ref[...],
                              preferred_element_type=jnp.float32)
                      + b2_ref[...]).astype(o_ref.dtype)

    return kernel


# ----------------------------------------------------------------------------
# pallas_call wrapper (jitted; statics: n_res, tb, pipeline-mode flag, vmem cap)
# ----------------------------------------------------------------------------
@functools.partial(jax.jit,
                   static_argnames=("n_res", "tb", "use_pipeline_modes",
                                    "vmem_limit"))
def _res_block_pallas(x_p, padded, *, n_res, tb, use_pipeline_modes, vmem_limit):
    batch_pad, in_pad = x_p.shape
    hid_pad = padded[0].shape[1]
    out_pad = padded[-2].shape[1]
    grid = (batch_pad // tb,)

    if use_pipeline_modes:
        # Streaming x: 3 buffers hide the step-0 weight-DMA prologue.
        x_spec = pl.BlockSpec((tb, in_pad), lambda i: (i, 0),
                              pipeline_mode=pl.Buffered(3))
        # Resident weights/biases: single buffer -- constant index_map means the
        # block never changes, so the default 2 buffers just double VMEM use.
        wkw = dict(pipeline_mode=pl.Buffered(1))
    else:
        x_spec = pl.BlockSpec((tb, in_pad), lambda i: (i, 0))
        wkw = {}

    in_specs = [x_spec] + [pl.BlockSpec(p.shape, lambda i: (0, 0), **wkw)
                           for p in padded]
    out_specs = pl.BlockSpec((tb, out_pad), lambda i: (i, 0))

    # Advisory cost estimate for XLA's scheduler.
    flops = 2 * batch_pad * (in_pad * hid_pad
                             + 2 * n_res * hid_pad * hid_pad
                             + hid_pad * out_pad)
    weight_bytes = sum(int(p.size) * p.dtype.itemsize for p in padded)
    bytes_accessed = (int(x_p.size) * x_p.dtype.itemsize + weight_bytes
                      + batch_pad * out_pad * x_p.dtype.itemsize)

    return pl.pallas_call(
        _make_res_block_kernel(n_res),
        out_shape=jax.ShapeDtypeStruct((batch_pad, out_pad), x_p.dtype),
        grid=grid,
        in_specs=in_specs,
        out_specs=out_specs,
        compiler_params=pltpu.CompilerParams(
            dimension_semantics=("parallel",),       # megacore sharding on v7x
            vmem_limit_bytes=vmem_limit),
        cost_estimate=pl.CostEstimate(flops=flops, transcendentals=0,
                                      bytes_accessed=int(bytes_accessed)),
    )(x_p, *padded)


# ----------------------------------------------------------------------------
# One-time parameter preparation (hoisted out of the per-call path)
# ----------------------------------------------------------------------------
def prepare_res_block_params(flat_params, n_res, compute_dtype=jnp.bfloat16):
    """Pad features to multiples of 128 and cast weights to bf16 ONCE.

    flat_params = (w1, b1, [wa, ba, wb, bb]*n_res, w2, b2);
    weights (in, out), biases (1, out).  Zero rows/cols + zero bias keep padded
    columns exactly zero through ReLU, so slicing the result back is exact.
    """
    in_dim, hid_dim = flat_params[0].shape
    out_dim = flat_params[-2].shape[1]
    in_pad = _round_up(in_dim, _LANE)
    hid_pad = _round_up(hid_dim, _LANE)
    out_pad = _round_up(out_dim, _LANE)

    def pad2(a, rows, cols, dtype):
        return jnp.pad(a, ((0, rows - a.shape[0]),
                           (0, cols - a.shape[1]))).astype(dtype)

    padded = [pad2(flat_params[0], in_pad, hid_pad, compute_dtype),
              pad2(flat_params[1], 1, hid_pad, jnp.float32)]
    idx = 2
    for _ in range(n_res):
        wa, ba, wb, bb = flat_params[idx:idx + 4]
        idx += 4
        padded += [pad2(wa, hid_pad, hid_pad, compute_dtype),
                   pad2(ba, 1, hid_pad, jnp.float32),
                   pad2(wb, hid_pad, hid_pad, compute_dtype),
                   pad2(bb, 1, hid_pad, jnp.float32)]
    padded += [pad2(flat_params[-2], hid_pad, out_pad, compute_dtype),
               pad2(flat_params[-1], 1, out_pad, jnp.float32)]

    dims = (in_dim, hid_dim, out_dim, in_pad, hid_pad, out_pad)
    return tuple(padded), dims


# ----------------------------------------------------------------------------
# Forward wrapper
# ----------------------------------------------------------------------------
def _vmem_capacity_bytes():
    """Physical VMEM per TensorCore (generation-aware; v7x = 64 MiB)."""
    try:
        cap = getattr(pltpu.get_tpu_info(), "vmem_capacity_bytes", None)
        if cap:
            return int(cap)
    except Exception:
        pass
    return 64 * 1024 * 1024      # conservative default (v7x per-TC)


def _choose_batch_tile(batch, block_rows):
    """Tile that minimizes last-tile padding; rows rounded to 16 (bf16 pack)."""
    n_tiles = max(1, _cdiv(batch, block_rows))
    tb = _round_up(_cdiv(batch, n_tiles), _ROW_PACK)
    return min(tb, _round_up(batch, _ROW_PACK))


_PIPELINE_MODES_OK = None   # tri-state cache for the pl.Buffered fallback


def res_block_forward(x, prepared_params, block_rows=512):
    """prepared_params = prepare_res_block_params(...); returns (batch, out_dim)."""
    global _PIPELINE_MODES_OK
    padded, dims = prepared_params
    in_dim, hid_dim, out_dim, in_pad, hid_pad, out_pad = dims
    n_res = (len(padded) - 4) // 4

    batch = x.shape[0]
    assert x.shape[1] == in_dim, "input feature dim mismatch"

    tb = _choose_batch_tile(batch, block_rows)
    batch_pad = _round_up(batch, tb)

    # Stream x in its original dtype (bf16 cast happens inside the kernel);
    # skip the wrapper pad entirely when shapes are already aligned.
    if batch_pad != batch or in_pad != in_dim:
        x_p = jnp.pad(x, ((0, batch_pad - batch), (0, in_pad - in_dim)))
    else:
        x_p = x

    # Generation-aware VMEM budget.
    cap = _vmem_capacity_bytes()
    weight_bytes = sum(int(p.size) * p.dtype.itemsize for p in padded)
    if 2 * weight_bytes > int(0.6 * cap):
        # TODO(synk): stream weights over an extra "arbitrary" grid axis (or
        # pltpu.emit_pipeline inside the body) when they don't fit VMEM-resident.
        raise NotImplementedError(
            "resident weights exceed this TPU's VMEM budget; streaming-weight "
            "path not implemented")
    x_tile = tb * in_pad * x.dtype.itemsize
    out_tile = tb * out_pad * x.dtype.itemsize
    live_acts = 4 * tb * hid_pad * 4      # live f32 h/t tiles Mosaic may spill
    needed = 2 * weight_bytes + 3 * x_tile + 2 * out_tile + live_acts
    vmem_limit = int(min(int(0.85 * cap),
                         max(32 * 1024 * 1024, needed + needed // 2)))

    if _PIPELINE_MODES_OK is not False:
        try:
            out_p = _res_block_pallas(x_p, padded, n_res=n_res, tb=tb,
                                      use_pipeline_modes=True,
                                      vmem_limit=vmem_limit)
            out_p = jax.block_until_ready(out_p)
            _PIPELINE_MODES_OK = True
        except Exception:
            _PIPELINE_MODES_OK = False
    if _PIPELINE_MODES_OK is False:
        out_p = _res_block_pallas(x_p, padded, n_res=n_res, tb=tb,
                                  use_pipeline_modes=False,
                                  vmem_limit=vmem_limit)

    return out_p[:batch, :out_dim]


# ----------------------------------------------------------------------------
# Deterministic parameter init (PyTorch nn.Linear default: U(-1/sqrt(fan_in), +))
# ----------------------------------------------------------------------------
def _init_linear(key, fan_in, fan_out):
    kw, kb = jax.random.split(key)
    bound = 1.0 / (fan_in ** 0.5)
    w = jax.random.uniform(kw, (fan_in, fan_out), jnp.float32, -bound, bound)
    b = jax.random.uniform(kb, (1, fan_out), jnp.float32, -bound, bound)
    return w, b


def init_res_block_params(key, cfg):
    """Flat param tuple and n_res, mirroring Res_Block(cfg, 'RL')."""
    cfg_rs = cfg[1:-1]
    n_res = len(cfg_rs) - 1              # Res_layers builds len(cfg_rs)-1 blocks
    res_bias = len(cfg_rs) > 2           # Res_layers: bias only when len(cfg)>2
    assert all(c == cfg[1] for c in cfg_rs), "residual dims must match cfg[1]"
    keys = jax.random.split(key, 2 + 2 * n_res)

    params = []
    params += list(_init_linear(keys[0], cfg[0], cfg[1]))               # FC1
    for i in range(n_res):                                              # RS
        for k in (keys[1 + 2 * i], keys[2 + 2 * i]):
            w, b = _init_linear(k, cfg[1], cfg[1])
            if not res_bias:
                b = jnp.zeros_like(b)
            params += [w, b]
    params += list(_init_linear(keys[-1], cfg[-2], cfg[-1]))            # FC2
    return tuple(params), n_res


# ----------------------------------------------------------------------------
# Pure-JAX references (mirror the PyTorch forward) for correctness checks
# ----------------------------------------------------------------------------
def res_block_reference(x, flat_params, n_res, matmul_dtype=jnp.float32):
    def mm(a, w):
        return jnp.dot(a.astype(matmul_dtype), w.astype(matmul_dtype),
                       preferred_element_type=jnp.float32)

    w1, b1 = flat_params[0], flat_params[1]
    w2, b2 = flat_params[-2], flat_params[-1]
    h = mm(x, w1) + b1
    idx = 2
    for _ in range(n_res):
        wa, ba, wb, bb = flat_params[idx:idx + 4]
        idx += 4
        t = jnp.maximum(mm(h, wa) + ba, 0.0)
        t = mm(t, wb) + bb
        h = jnp.maximum(t + h, 0.0)
    return mm(h, w2) + b2


# ----------------------------------------------------------------------------
if __name__ == "__main__":
    # Small config consistent with Res_Block: cfg = [in, hidden, hidden, hidden, out]
    cfg = [16, 32, 32, 32, 8]
    batch = 8

    key = jax.random.PRNGKey(0)
    k_x, k_p = jax.random.split(key)
    x = jax.random.normal(k_x, (batch, cfg[0]), jnp.float32)

    params, n_res = init_res_block_params(k_p, cfg)
    prepared = prepare_res_block_params(params, n_res)    # one-time pad + bf16 cast

    out = res_block_forward(x, prepared, block_rows=512)
    out = jax.block_until_ready(out)
    assert out.shape == (batch, cfg[-1])

    # Check against a reference using the kernel's mixed precision
    # (bf16 matmul inputs, f32 accumulation / bias / ReLU).
    ref_mixed = res_block_reference(x, params, n_res, matmul_dtype=jnp.bfloat16)
    assert jnp.allclose(out, ref_mixed, atol=1e-2, rtol=1e-2), "mismatch vs bf16 reference"

    # Check against the full-f32 PyTorch-equivalent forward (bf16-level tolerance).
    ref_f32 = res_block_reference(x, params, n_res, matmul_dtype=jnp.float32)
    assert jnp.allclose(out, ref_f32, atol=5e-2, rtol=5e-2), "mismatch vs f32 reference"

    print("KERNEL_OK")
</pallas_src>

<mosaic_0001>
module attributes {stable_mosaic.version = 11 : i64} {
  func.func @kernel(%arg0: i32, %arg1: memref<16x128xf32, #tpu.memory_space<vmem>>, %arg2: memref<128x128xbf16, #tpu.memory_space<vmem>>, %arg3: memref<1x128xf32, #tpu.memory_space<vmem>>, %arg4: memref<128x128xbf16, #tpu.memory_space<vmem>>, %arg5: memref<1x128xf32, #tpu.memory_space<vmem>>, %arg6: memref<128x128xbf16, #tpu.memory_space<vmem>>, %arg7: memref<1x128xf32, #tpu.memory_space<vmem>>, %arg8: memref<128x128xbf16, #tpu.memory_space<vmem>>, %arg9: memref<1x128xf32, #tpu.memory_space<vmem>>, %arg10: memref<128x128xbf16, #tpu.memory_space<vmem>>, %arg11: memref<1x128xf32, #tpu.memory_space<vmem>>, %arg12: memref<128x128xbf16, #tpu.memory_space<vmem>>, %arg13: memref<1x128xf32, #tpu.memory_space<vmem>>, %arg14: memref<16x128xf32, #tpu.memory_space<vmem>>) attributes {dimension_semantics = [#tpu.dimension_semantics<parallel>], iteration_bounds = array<i64: 1>, scalar_prefetch = 0 : i64, scratch_operands = 0 : i64, tpu.core_type = #tpu.core_type<tc>, window_params = [{transform_indices = @transform_0, window_bounds = array<i64: 16, 128>}, {pipeline_mode = #tpu.pipeline_mode<synchronous>, transform_indices = @transform_1, window_bounds = array<i64: 128, 128>}, {pipeline_mode = #tpu.pipeline_mode<synchronous>, transform_indices = @transform_2, window_bounds = array<i64: 1, 128>}, {pipeline_mode = #tpu.pipeline_mode<synchronous>, transform_indices = @transform_3, window_bounds = array<i64: 128, 128>}, {pipeline_mode = #tpu.pipeline_mode<synchronous>, transform_indices = @transform_4, window_bounds = array<i64: 1, 128>}, {pipeline_mode = #tpu.pipeline_mode<synchronous>, transform_indices = @transform_5, window_bounds = array<i64: 128, 128>}, {pipeline_mode = #tpu.pipeline_mode<synchronous>, transform_indices = @transform_6, window_bounds = array<i64: 1, 128>}, {pipeline_mode = #tpu.pipeline_mode<synchronous>, transform_indices = @transform_7, window_bounds = array<i64: 128, 128>}, {pipeline_mode = #tpu.pipeline_mode<synchronous>, transform_indices = @transform_8, window_bounds = array<i64: 1, 128>}, {pipeline_mode = #tpu.pipeline_mode<synchronous>, transform_indices = @transform_9, window_bounds = array<i64: 128, 128>}, {pipeline_mode = #tpu.pipeline_mode<synchronous>, transform_indices = @transform_10, window_bounds = array<i64: 1, 128>}, {pipeline_mode = #tpu.pipeline_mode<synchronous>, transform_indices = @transform_11, window_bounds = array<i64: 128, 128>}, {pipeline_mode = #tpu.pipeline_mode<synchronous>, transform_indices = @transform_12, window_bounds = array<i64: 1, 128>}, {transform_indices = @transform_13, window_bounds = array<i64: 16, 128>}]} {
    %c0 = arith.constant 0 : index
    %c0_0 = arith.constant 0 : index
    %0 = vector.load %arg1[%c0, %c0_0] : memref<16x128xf32, #tpu.memory_space<vmem>>, vector<16x128xf32>
    %1 = arith.truncf %0 : vector<16x128xf32> to vector<16x128xbf16>
    %c0_1 = arith.constant 0 : index
    %c0_2 = arith.constant 0 : index
    %2 = vector.load %arg2[%c0_1, %c0_2] : memref<128x128xbf16, #tpu.memory_space<vmem>>, vector<128x128xbf16>
    %cst = arith.constant dense<0.000000e+00> : vector<16x128xf32>
    %3 = tpu.matmul %1, %2, %cst {dimension_numbers = #tpu.dot_dimension_numbers<[1], [0], [0], [1], [0, 0, 1, 1], [], []>} : vector<16x128xbf16>, vector<128x128xbf16>, vector<16x128xf32> -> vector<16x128xf32>
    %c0_3 = arith.constant 0 : index
    %c0_4 = arith.constant 0 : index
    %4 = vector.load %arg3[%c0_3, %c0_4] : memref<1x128xf32, #tpu.memory_space<vmem>>, vector<1x128xf32>
    %5 = vector.broadcast %4 : vector<1x128xf32> to vector<16x128xf32>
    %6 = arith.addf %3, %5 : vector<16x128xf32>
    %7 = arith.truncf %6 : vector<16x128xf32> to vector<16x128xbf16>
    %c0_5 = arith.constant 0 : index
    %c0_6 = arith.constant 0 : index
    %8 = vector.load %arg4[%c0_5, %c0_6] : memref<128x128xbf16, #tpu.memory_space<vmem>>, vector<128x128xbf16>
    %cst_7 = arith.constant dense<0.000000e+00> : vector<16x128xf32>
    %9 = tpu.matmul %7, %8, %cst_7 {dimension_numbers = #tpu.dot_dimension_numbers<[1], [0], [0], [1], [0, 0, 1, 1], [], []>} : vector<16x128xbf16>, vector<128x128xbf16>, vector<16x128xf32> -> vector<16x128xf32>
    %c0_8 = arith.constant 0 : index
    %c0_9 = arith.constant 0 : index
    %10 = vector.load %arg5[%c0_8, %c0_9] : memref<1x128xf32, #tpu.memory_space<vmem>>, vector<1x128xf32>
    %11 = vector.broadcast %10 : vector<1x128xf32> to vector<16x128xf32>
    %12 = arith.addf %9, %11 : vector<16x128xf32>
    %cst_10 = arith.constant 0.000000e+00 : f32
    %13 = vector.broadcast %cst_10 : f32 to vector<16x128xf32>
    %14 = arith.maximumf %12, %13 : vector<16x128xf32>
    %15 = arith.truncf %14 : vector<16x128xf32> to vector<16x128xbf16>
    %c0_11 = arith.constant 0 : index
    %c0_12 = arith.constant 0 : index
    %16 = vector.load %arg6[%c0_11, %c0_12] : memref<128x128xbf16, #tpu.memory_space<vmem>>, vector<128x128xbf16>
    %cst_13 = arith.constant dense<0.000000e+00> : vector<16x128xf32>
    %17 = tpu.matmul %15, %16, %cst_13 {dimension_numbers = #tpu.dot_dimension_numbers<[1], [0], [0], [1], [0, 0, 1, 1], [], []>} : vector<16x128xbf16>, vector<128x128xbf16>, vector<16x128xf32> -> vector<16x128xf32>
    %c0_14 = arith.constant 0 : index
    %c0_15 = arith.constant 0 : index
    %18 = vector.load %arg7[%c0_14, %c0_15] : memref<1x128xf32, #tpu.memory_space<vmem>>, vector<1x128xf32>
    %19 = vector.broadcast %18 : vector<1x128xf32> to vector<16x128xf32>
    %20 = arith.addf %17, %19 : vector<16x128xf32>
    %21 = arith.addf %20, %6 : vector<16x128xf32>
    %cst_16 = arith.constant 0.000000e+00 : f32
    %22 = vector.broadcast %cst_16 : f32 to vector<16x128xf32>
    %23 = arith.maximumf %21, %22 : vector<16x128xf32>
    %24 = arith.truncf %23 : vector<16x128xf32> to vector<16x128xbf16>
    %c0_17 = arith.constant 0 : index
    %c0_18 = arith.constant 0 : index
    %25 = vector.load %arg8[%c0_17, %c0_18] : memref<128x128xbf16, #tpu.memory_space<vmem>>, vector<128x128xbf16>
    %cst_19 = arith.constant dense<0.000000e+00> : vector<16x128xf32>
    %26 = tpu.matmul %24, %25, %cst_19 {dimension_numbers = #tpu.dot_dimension_numbers<[1], [0], [0], [1], [0, 0, 1, 1], [], []>} : vector<16x128xbf16>, vector<128x128xbf16>, vector<16x128xf32> -> vector<16x128xf32>
    %c0_20 = arith.constant 0 : index
    %c0_21 = arith.constant 0 : index
    %27 = vector.load %arg9[%c0_20, %c0_21] : memref<1x128xf32, #tpu.memory_space<vmem>>, vector<1x128xf32>
    %28 = vector.broadcast %27 : vector<1x128xf32> to vector<16x128xf32>
    %29 = arith.addf %26, %28 : vector<16x128xf32>
    %cst_22 = arith.constant 0.000000e+00 : f32
    %30 = vector.broadcast %cst_22 : f32 to vector<16x128xf32>
    %31 = arith.maximumf %29, %30 : vector<16x128xf32>
    %32 = arith.truncf %31 : vector<16x128xf32> to vector<16x128xbf16>
    %c0_23 = arith.constant 0 : index
    %c0_24 = arith.constant 0 : index
    %33 = vector.load %arg10[%c0_23, %c0_24] : memref<128x128xbf16, #tpu.memory_space<vmem>>, vector<128x128xbf16>
    %cst_25 = arith.constant dense<0.000000e+00> : vector<16x128xf32>
    %34 = tpu.matmul %32, %33, %cst_25 {dimension_numbers = #tpu.dot_dimension_numbers<[1], [0], [0], [1], [0, 0, 1, 1], [], []>} : vector<16x128xbf16>, vector<128x128xbf16>, vector<16x128xf32> -> vector<16x128xf32>
    %c0_26 = arith.constant 0 : index
    %c0_27 = arith.constant 0 : index
    %35 = vector.load %arg11[%c0_26, %c0_27] : memref<1x128xf32, #tpu.memory_space<vmem>>, vector<1x128xf32>
    %36 = vector.broadcast %35 : vector<1x128xf32> to vector<16x128xf32>
    %37 = arith.addf %34, %36 : vector<16x128xf32>
    %38 = arith.addf %37, %23 : vector<16x128xf32>
    %cst_28 = arith.constant 0.000000e+00 : f32
    %39 = vector.broadcast %cst_28 : f32 to vector<16x128xf32>
    %40 = arith.maximumf %38, %39 : vector<16x128xf32>
    %41 = arith.truncf %40 : vector<16x128xf32> to vector<16x128xbf16>
    %c0_29 = arith.constant 0 : index
    %c0_30 = arith.constant 0 : index
    %42 = vector.load %arg12[%c0_29, %c0_30] : memref<128x128xbf16, #tpu.memory_space<vmem>>, vector<128x128xbf16>
    %cst_31 = arith.constant dense<0.000000e+00> : vector<16x128xf32>
    %43 = tpu.matmul %41, %42, %cst_31 {dimension_numbers = #tpu.dot_dimension_numbers<[1], [0], [0], [1], [0, 0, 1, 1], [], []>} : vector<16x128xbf16>, vector<128x128xbf16>, vector<16x128xf32> -> vector<16x128xf32>
    %c0_32 = arith.constant 0 : index
    %c0_33 = arith.constant 0 : index
    %44 = vector.load %arg13[%c0_32, %c0_33] : memref<1x128xf32, #tpu.memory_space<vmem>>, vector<1x128xf32>
    %45 = vector.broadcast %44 : vector<1x128xf32> to vector<16x128xf32>
    %46 = arith.addf %43, %45 : vector<16x128xf32>
    %c0_34 = arith.constant 0 : index
    %c0_35 = arith.constant 0 : index
    %47 = vector.load %arg14[%c0_34, %c0_35] : memref<16x128xf32, #tpu.memory_space<vmem>>, vector<16x128xf32>
    tpu.vector_store %arg14[%c0_34, %c0_35], %46 {strides = array<i32>} : memref<16x128xf32, #tpu.memory_space<vmem>>, vector<16x128xf32>,
    return
  }
  func.func @transform_0(%arg0: i32) -> (i32, i32) {
    %c0_i32 = arith.constant 0 : i32
    %c0_i32_0 = arith.constant 0 : i32
    return %arg0, %c0_i32 : i32, i32
  }
  func.func @transform_1(%arg0: i32) -> (i32, i32) {
    %c0_i32 = arith.constant 0 : i32
    %c0_i32_0 = arith.constant 0 : i32
    %c0_i32_1 = arith.constant 0 : i32
    return %c0_i32, %c0_i32_0 : i32, i32
  }
  func.func @transform_2(%arg0: i32) -> (i32, i32) {
    %c0_i32 = arith.constant 0 : i32
    %c0_i32_0 = arith.constant 0 : i32
    %c0_i32_1 = arith.constant 0 : i32
    return %c0_i32, %c0_i32_0 : i32, i32
  }
  func.func @transform_3(%arg0: i32) -> (i32, i32) {
    %c0_i32 = arith.constant 0 : i32
    %c0_i32_0 = arith.constant 0 : i32
    %c0_i32_1 = arith.constant 0 : i32
    return %c0_i32, %c0_i32_0 : i32, i32
  }
  func.func @transform_4(%arg0: i32) -> (i32, i32) {
    %c0_i32 = arith.constant 0 : i32
    %c0_i32_0 = arith.constant 0 : i32
    %c0_i32_1 = arith.constant 0 : i32
    return %c0_i32, %c0_i32_0 : i32, i32
  }
  func.func @transform_5(%arg0: i32) -> (i32, i32) {
    %c0_i32 = arith.constant 0 : i32
    %c0_i32_0 = arith.constant 0 : i32
    %c0_i32_1 = arith.constant 0 : i32
    return %c0_i32, %c0_i32_0 : i32, i32
  }
  func.func @transform_6(%arg0: i32) -> (i32, i32) {
    %c0_i32 = arith.constant 0 : i32
    %c0_i32_0 = arith.constant 0 : i32
    %c0_i32_1 = arith.constant 0 : i32
    return %c0_i32, %c0_i32_0 : i32, i32
  }
  func.func @transform_7(%arg0: i32) -> (i32, i32) {
    %c0_i32 = arith.constant 0 : i32
    %c0_i32_0 = arith.constant 0 : i32
    %c0_i32_1 = arith.constant 0 : i32
    return %c0_i32, %c0_i32_0 : i32, i32
  }
  func.func @transform_8(%arg0: i32) -> (i32, i32) {
    %c0_i32 = arith.constant 0 : i32
    %c0_i32_0 = arith.constant 0 : i32
    %c0_i32_1 = arith.constant 0 : i32
    return %c0_i32, %c0_i32_0 : i32, i32
  }
  func.func @transform_9(%arg0: i32) -> (i32, i32) {
    %c0_i32 = arith.constant 0 : i32
    %c0_i32_0 = arith.constant 0 : i32
    %c0_i32_1 = arith.constant 0 : i32
    return %c0_i32, %c0_i32_0 : i32, i32
  }
  func.func @transform_10(%arg0: i32) -> (i32, i32) {
    %c0_i32 = arith.constant 0 : i32
    %c0_i32_0 = arith.constant 0 : i32
    %c0_i32_1 = arith.constant 0 : i32
    return %c0_i32, %c0_i32_0 : i32, i32
  }
  func.func @transform_11(%arg0: i32) -> (i32, i32) {
    %c0_i32 = arith.constant 0 : i32
    %c0_i32_0 = arith.constant 0 : i32
    %c0_i32_1 = arith.constant 0 : i32
    return %c0_i32, %c0_i32_0 : i32, i32
  }
  func.func @transform_12(%arg0: i32) -> (i32, i32) {
    %c0_i32 = arith.constant 0 : i32
    %c0_i32_0 = arith.constant 0 : i32
    %c0_i32_1 = arith.constant 0 : i32
    return %c0_i32, %c0_i32_0 : i32, i32
  }
  func.func @transform_13(%arg0: i32) -> (i32, i32) {
    %c0_i32 = arith.constant 0 : i32
    %c0_i32_0 = arith.constant 0 : i32
    return %arg0, %c0_i32 : i32, i32
  }
}

</mosaic_0001>

<llo_original>
// kernel: _res_block_pallas.1
$region0: #{_res_block_pallas.1}
  #allocation0 [shape = 'u32[]', space=smem, size = 0x4, offset = 0x4, fixed_abs, tag = 'smem constant byte address 0x4 - core index']
  #allocation1 [shape = 'u32[72,128]{1,0:T(1,128)}', space=vmem, size = 0x9000, scoped, tag = 'internal scratch']
  %s0 = inlined_call_operand.hbm [shape: f32[16,128], index: 0, kind: input, shape index: {}]
  %s1 = inlined_call_operand.hbm [shape: bf16[128,128], index: 1, kind: input, shape index: {}]
  %s2 = inlined_call_operand.vmem [shape: f32[1,128], index: 2, kind: input, shape index: {}]
  %s3 = inlined_call_operand.hbm [shape: bf16[128,128], index: 3, kind: input, shape index: {}]
  %s4 = inlined_call_operand.vmem [shape: f32[1,128], index: 4, kind: input, shape index: {}]
  %s5 = inlined_call_operand.hbm [shape: bf16[128,128], index: 5, kind: input, shape index: {}]
  %s6 = inlined_call_operand.vmem [shape: f32[1,128], index: 6, kind: input, shape index: {}]
  %s7 = inlined_call_operand.hbm [shape: bf16[128,128], index: 7, kind: input, shape index: {}]
  %s8 = inlined_call_operand.vmem [shape: f32[1,128], index: 8, kind: input, shape index: {}]
  %s9 = inlined_call_operand.hbm [shape: bf16[128,128], index: 9, kind: input, shape index: {}]
  %s10 = inlined_call_operand.vmem [shape: f32[1,128], index: 10, kind: input, shape index: {}]
  %s11 = inlined_call_operand.hbm [shape: bf16[128,128], index: 11, kind: input, shape index: {}]
  %s12 = inlined_call_operand.vmem [shape: f32[1,128], index: 12, kind: input, shape index: {}]
  %s13 = inlined_call_operand.hbm [shape: f32[16,128], index: 13, kind: output, shape index: {}]
  %s14 = sld [smem:[#allocation0]]
  $region90: #{_res_block_pallas.1} parent=0
    _
  %s16 = ssub.s32 1, %s14
  %s17 = scalar_select 0, %s16, %s14
  $region1: #{_res_block_pallas.1} parent=0
    #allocation2 [shape = 'u8[8192]{0}', space=vmem, size = 0x2000, scoped, tag = 'input window, operand 0, single buffered']
    #allocation3 [shape = 's32[1]{0}', space=sflag, size = 0x4, scoped, tag = 'scoped memory for _res_block_pallas.1']
    #allocation4 [shape = 's32[1]{0}', space=sflag, size = 0x4, scoped, tag = 'scoped memory for _res_block_pallas.1']
    #allocation5 [shape = 'u8[32768]{0}', space=vmem, size = 0x8000, scoped, tag = 'input window, operand 1, single buffered']
    #allocation6 [shape = 's32[1]{0}', space=sflag, size = 0x4, scoped, tag = 'scoped memory for _res_block_pallas.1']
    #allocation7 [shape = 'u8[32768]{0}', space=vmem, size = 0x8000, scoped, tag = 'input window, operand 3, single buffered']
    #allocation8 [shape = 'u8[32768]{0}', space=vmem, size = 0x8000, scoped, tag = 'input window, operand 5, single buffered']
    #allocation9 [shape = 's32[1]{0}', space=sflag, size = 0x4, scoped, tag = 'scoped memory for _res_block_pallas.1']
    #allocation10 [shape = 'u8[32768]{0}', space=vmem, size = 0x8000, scoped, tag = 'input window, operand 7, single buffered']
    #allocation11 [shape = 'u8[32768]{0}', space=vmem, size = 0x8000, scoped, tag = 'input window, operand 9, single buffered']
    #allocation12 [shape = 's32[1]{0}', space=sflag, size = 0x4, scoped, tag = 'scoped memory for _res_block_pallas.1']
    #allocation13 [shape = 'u8[32768]{0}', space=vmem, size = 0x8000, scoped, tag = 'input window, operand 11, single buffered']
    #allocation14 [shape = 'u8[8192]{0}', space=vmem, size = 0x2000, scoped, tag = 'output window, operand 0, single buffered']
    %18 = vsyncpa [#allocation3], 0
    %19 = vsyncpa [#allocation6], 0
    %20 = vsyncpa [#allocation9], 0
    %21 = vsyncpa [#allocation12], 0
    %22 = vsyncpa [#allocation4], 0
    // Predicated region
    $region2: #{_res_block_pallas.1} parent=1 // pred_check
      _
    $region3: #{_res_block_pallas.1} parent=1 // pred_check_branch
      %24 = sbr.rel (0) target = $region5
    $region4: #{_res_block_pallas.1} parent=1 // pred_region
      %26 = vsyncadd [#allocation3], 0
      %s27 = sshll.u32 %s0, 4
      %s28 = int_to_ptr.hbm [resolvable:$true] %s27
      %s29 = sshll.u32 [#allocation2], 4
      %s30 = int_to_ptr.vmem [resolvable:$true] %s29
      %35 = dma.hbm_to_vmem [thread:$0]  %s28, 256, %s30, [#allocation3], 128, 128, 8
    $region5: #{_res_block_pallas.1} parent=1 // pred_fallthru
      _
    // Predicated region
    $region6: #{_res_block_pallas.1} parent=1 // pred_check
      _
    $region7: #{_res_block_pallas.1} parent=1 // pred_check_branch
      %37 = sbr.rel (0) target = $region9
    $region8: #{_res_block_pallas.1} parent=1 // pred_region
      %39 = vsyncadd [#allocation6], 0
      %s40 = sshll.u32 %s1, 4
      %s41 = int_to_ptr.hbm [resolvable:$true] %s40
      %s42 = sshll.u32 [#allocation5], 4
      %s43 = int_to_ptr.vmem [resolvable:$true] %s42
      %48 = dma.hbm_to_vmem [thread:$0]  %s41, 1024, %s43, [#allocation6], 64, 64, 4
    $region9: #{_res_block_pallas.1} parent=1 // pred_fallthru
      _
    // Predicated region
    $region10: #{_res_block_pallas.1} parent=1 // pred_check
      _
    $region11: #{_res_block_pallas.1} parent=1 // pred_check_branch
      %50 = sbr.rel (0) target = $region13
    $region12: #{_res_block_pallas.1} parent=1 // pred_region
      _
    $region13: #{_res_block_pallas.1} parent=1 // pred_fallthru
      _
    // Predicated region
    $region14: #{_res_block_pallas.1} parent=1 // pred_check
      _
    $region15: #{_res_block_pallas.1} parent=1 // pred_check_branch
      %52 = sbr.rel (0) target = $region17
    $region16: #{_res_block_pallas.1} parent=1 // pred_region
      %54 = vsyncadd [#allocation6], 0
      %s55 = sshll.u32 %s3, 4
      %s56 = int_to_ptr.hbm [resolvable:$true] %s55
      %s57 = sshll.u32 [#allocation7], 4
      %s58 = int_to_ptr.vmem [resolvable:$true] %s57
      %63 = dma.hbm_to_vmem [thread:$0]  %s56, 1024, %s58, [#allocation6], 64, 64, 4
    $region17: #{_res_block_pallas.1} parent=1 // pred_fallthru
      _
    // Predicated region
    $region18: #{_res_block_pallas.1} parent=1 // pred_check
      _
    $region19: #{_res_block_pallas.1} parent=1 // pred_check_branch
      %65 = sbr.rel (0) target = $region21
    $region20: #{_res_block_pallas.1} parent=1 // pred_region
      _
    $region21: #{_res_block_pallas.1} parent=1 // pred_fallthru
      _
    // Predicated region
    $region22: #{_res_block_pallas.1} parent=1 // pred_check
      _
    $region23: #{_res_block_pallas.1} parent=1 // pred_check_branch
      %67 = sbr.rel (0) target = $region25
    $region24: #{_res_block_pallas.1} parent=1 // pred_region
      %69 = vsyncadd [#allocation9], 0
      %s70 = sshll.u32 %s5, 4
      %s71 = int_to_ptr.hbm [resolvable:$true] %s70
      %s72 = sshll.u32 [#allocation8], 4
      %s73 = int_to_ptr.vmem [resolvable:$true] %s72
      %78 = dma.hbm_to_vmem [thread:$0]  %s71, 1024, %s73, [#allocation9], 64, 64, 4
    $region25: #{_res_block_pallas.1} parent=1 // pred_fallthru
      _
    // Predicated region
    $region26: #{_res_block_pallas.1} parent=1 // pred_check
      _
    $region27: #{_res_block_pallas.1} parent=1 // pred_check_branch
      %80 = sbr.rel (0) target = $region29
    $region28: #{_res_block_pallas.1} parent=1 // pred_region
      _
    $region29: #{_res_block_pallas.1} parent=1 // pred_fallthru
      _
    // Predicated region
    $region30: #{_res_block_pallas.1} parent=1 // pred_check
      _
    $region31: #{_res_block_pallas.1} parent=1 // pred_check_branch
      %82 = sbr.rel (0) target = $region33
    $region32: #{_res_block_pallas.1} parent=1 // pred_region
      %84 = vsyncadd [#allocation9], 0
      %s85 = sshll.u32 %s7, 4
      %s86 = int_to_ptr.hbm [resolvable:$true] %s85
      %s87 = sshll.u32 [#allocation10], 4
      %s88 = int_to_ptr.vmem [resolvable:$true] %s87
      %93 = dma.hbm_to_vmem [thread:$0]  %s86, 1024, %s88, [#allocation9], 64, 64, 4
    $region33: #{_res_block_pallas.1} parent=1 // pred_fallthru
      _
    // Predicated region
    $region34: #{_res_block_pallas.1} parent=1 // pred_check
      _
    $region35: #{_res_block_pallas.1} parent=1 // pred_check_branch
      %95 = sbr.rel (0) target = $region37
    $region36: #{_res_block_pallas.1} parent=1 // pred_region
      _
    $region37: #{_res_block_pallas.1} parent=1 // pred_fallthru
      _
    // Predicated region
    $region38: #{_res_block_pallas.1} parent=1 // pred_check
      _
    $region39: #{_res_block_pallas.1} parent=1 // pred_check_branch
      %97 = sbr.rel (0) target = $region41
    $region40: #{_res_block_pallas.1} parent=1 // pred_region
      %99 = vsyncadd [#allocation12], 0
      %s100 = sshll.u32 %s9, 4
      %s101 = int_to_ptr.hbm [resolvable:$true] %s100
      %s102 = sshll.u32 [#allocation11], 4
      %s103 = int_to_ptr.vmem [resolvable:$true] %s102
      %108 = dma.hbm_to_vmem [thread:$0]  %s101, 1024, %s103, [#allocation12], 64, 64, 4
    $region41: #{_res_block_pallas.1} parent=1 // pred_fallthru
      _
    // Predicated region
    $region42: #{_res_block_pallas.1} parent=1 // pred_check
      _
    $region43: #{_res_block_pallas.1} parent=1 // pred_check_branch
      %110 = sbr.rel (0) target = $region45
    $region44: #{_res_block_pallas.1} parent=1 // pred_region
      _
    $region45: #{_res_block_pallas.1} parent=1 // pred_fallthru
      _
    // Predicated region
    $region46: #{_res_block_pallas.1} parent=1 // pred_check
      _
    $region47: #{_res_block_pallas.1} parent=1 // pred_check_branch
      %112 = sbr.rel (0) target = $region49
    $region48: #{_res_block_pallas.1} parent=1 // pred_region
      %114 = vsyncadd [#allocation12], 0
      %s115 = sshll.u32 %s11, 4
      %s116 = int_to_ptr.hbm [resolvable:$true] %s115
      %s117 = sshll.u32 [#allocation13], 4
      %s118 = int_to_ptr.vmem [resolvable:$true] %s117
      %123 = dma.hbm_to_vmem [thread:$0]  %s116, 1024, %s118, [#allocation12], 64, 64, 4
    $region49: #{_res_block_pallas.1} parent=1 // pred_fallthru
      _
    // Predicated region
    $region50: #{_res_block_pallas.1} parent=1 // pred_check
      _
    $region51: #{_res_block_pallas.1} parent=1 // pred_check_branch
      %125 = sbr.rel (0) target = $region53
    $region52: #{_res_block_pallas.1} parent=1 // pred_region
      _
    $region53: #{_res_block_pallas.1} parent=1 // pred_fallthru
      _
    // Predicated region
    $region54: #{_res_block_pallas.1} parent=1 // pred_check
      _
    $region55: #{_res_block_pallas.1} parent=1 // pred_check_branch
      %127 = sbr.rel (0) target = $region57
    $region56: #{_res_block_pallas.1} parent=1 // pred_region
      %129 = dma.done [#allocation3], 256
    $region57: #{_res_block_pallas.1} parent=1 // pred_fallthru
      _
    // Predicated region
    $region58: #{_res_block_pallas.1} parent=1 // pred_check
      _
    $region59: #{_res_block_pallas.1} parent=1 // pred_check_branch
      %131 = sbr.rel (0) target = $region61
    $region60: #{_res_block_pallas.1} parent=1 // pred_region
      %133 = dma.done [#allocation6], 1024
    $region61: #{_res_block_pallas.1} parent=1 // pred_fallthru
      _
    // Predicated region
    $region62: #{_res_block_pallas.1} parent=1 // pred_check
      _
    $region63: #{_res_block_pallas.1} parent=1 // pred_check_branch
      %135 = sbr.rel (0) target = $region65
    $region64: #{_res_block_pallas.1} parent=1 // pred_region
      %137 = dma.done [#allocation6], 1024
    $region65: #{_res_block_pallas.1} parent=1 // pred_fallthru
      _
    // Predicated region
    $region66: #{_res_block_pallas.1} parent=1 // pred_check
      _
    $region67: #{_res_block_pallas.1} parent=1 // pred_check_branch
      %139 = sbr.rel (0) target = $region69
    $region68: #{_res_block_pallas.1} parent=1 // pred_region
      %141 = dma.done [#allocation9], 1024
    $region69: #{_res_block_pallas.1} parent=1 // pred_fallthru
      _
    // Predicated region
    $region70: #{_res_block_pallas.1} parent=1 // pred_check
      _
    $region71: #{_res_block_pallas.1} parent=1 // pred_check_branch
      %143 = sbr.rel (0) target = $region73
    $region72: #{_res_block_pallas.1} parent=1 // pred_region
      %145 = dma.done [#allocation9], 1024
    $region73: #{_res_block_pallas.1} parent=1 // pred_fallthru
      _
    // Predicated region
    $region74: #{_res_block_pallas.1} parent=1 // pred_check
      _
    $region75: #{_res_block_pallas.1} parent=1 // pred_check_branch
      %147 = sbr.rel (0) target = $region77
    $region76: #{_res_block_pallas.1} parent=1 // pred_region
      %149 = dma.done [#allocation12], 1024
    $region77: #{_res_block_pallas.1} parent=1 // pred_fallthru
      _
    // Predicated region
    $region78: #{_res_block_pallas.1} parent=1 // pred_check
      _
    $region79: #{_res_block_pallas.1} parent=1 // pred_check_branch
      %151 = sbr.rel (0) target = $region81
    $region80: #{_res_block_pallas.1} parent=1 // pred_region
      %153 = dma.done [#allocation12], 1024
    $region81: #{_res_block_pallas.1} parent=1 // pred_fallthru
      _
    %v154 = vld [vmem:[#allocation2] sm:$0xff]
    %v155 = vld [vmem:[#allocation2 + $0x8] sm:$0xff]
    %v156 = vpack.c.bf16 %v155, %v154
    %v157 = vld [vmem:[#allocation5] sm:$0xf]
    %v158 = vld [vmem:[#allocation5 + $0x4] sm:$0xf]
    %v159 = vld [vmem:[#allocation5 + $0x8] sm:$0xf]
    %v160 = vld [vmem:[#allocation5 + $0xc] sm:$0xf]
    %v161 = vld [vmem:[#allocation5 + $0x10] sm:$0xf]
    %v162 = vld [vmem:[#allocation5 + $0x14] sm:$0xf]
    %v163 = vld [vmem:[#allocation5 + $0x18] sm:$0xf]
    %v164 = vld [vmem:[#allocation5 + $0x1c] sm:$0xf]
    %v165 = vld [vmem:[#allocation5 + $0x20] sm:$0xf]
    %v166 = vld [vmem:[#allocation5 + $0x24] sm:$0xf]
    %v167 = vld [vmem:[#allocation5 + $0x28] sm:$0xf]
    %v168 = vld [vmem:[#allocation5 + $0x2c] sm:$0xf]
    %v169 = vld [vmem:[#allocation5 + $0x30] sm:$0xf]
    %v170 = vld [vmem:[#allocation5 + $0x34] sm:$0xf]
    %v171 = vld [vmem:[#allocation5 + $0x38] sm:$0xf]
    %v172 = vld [vmem:[#allocation5 + $0x3c] sm:$0xf]
    %v173 = vld [vmem:[%s2] sm:$0x1]
    %v175 = vperm.slane %v173, 0
    %v193 = vunpack.c.l.b16 %v157
    %v194 = vunpack.c.l.b16 %v158
    %v195 = vunpack.c.l.b16 %v159
    %v196 = vunpack.c.l.b16 %v160
    %v197 = vunpack.c.l.b16 %v161
    %v198 = vunpack.c.l.b16 %v162
    %v199 = vunpack.c.l.b16 %v163
    %v200 = vunpack.c.l.b16 %v164
    %v201 = vunpack.c.l.b16 %v165
    %v202 = vunpack.c.l.b16 %v166
    %v203 = vunpack.c.l.b16 %v167
    %v204 = vunpack.c.l.b16 %v168
    %v205 = vunpack.c.l.b16 %v169
    %v206 = vunpack.c.l.b16 %v170
    %v207 = vunpack.c.l.b16 %v171
    %v208 = vunpack.c.l.b16 %v172
    %v209 = vpack.c.b16 %v194, %v193
    %v210 = vpack.c.b16 %v196, %v195
    %v211 = vpack.c.b16 %v198, %v197
    %v212 = vpack.c.b16 %v200, %v199
    %v213 = vpack.c.b16 %v202, %v201
    %v214 = vpack.c.b16 %v204, %v203
    %v215 = vpack.c.b16 %v206, %v205
    %v216 = vpack.c.b16 %v208, %v207
    %225 = vmatpush.bf16.msra.mxu0 %v216
    %226 = vmatpush.bf16.msra.mxu0 %v215
    %227 = vmatpush.bf16.msra.mxu0 %v214
    %228 = vmatpush.bf16.msra.mxu0 %v213
    %229 = vmatpush.bf16.msra.mxu0 %v212
    %230 = vmatpush.bf16.msra.mxu0 %v211
    %231 = vmatpush.bf16.msra.mxu0 %v210
    %232 = vmatpush.bf16.msra.mxu0 %v209
    %233 = vmatmul.bf16.gmra.mxu0 %v156
    %v234 = vpop.f32.mrf.mxu0
    %v235 = vadd.f32 %v175, %v234
    %v236 = vpop.f32.mrf.mxu0
    %v237 = vadd.f32 %v175, %v236
    %238 = vdwg.mxu0
    %v239 = vpack.c.bf16 %v237, %v235
    %v240 = vld [vmem:[#allocation7] sm:$0xf]
    %v241 = vld [vmem:[#allocation7 + $0x4] sm:$0xf]
    %v242 = vld [vmem:[#allocation7 + $0x8] sm:$0xf]
    %v243 = vld [vmem:[#allocation7 + $0xc] sm:$0xf]
    %v244 = vld [vmem:[#allocation7 + $0x10] sm:$0xf]
    %v245 = vld [vmem:[#allocation7 + $0x14] sm:$0xf]
    %v246 = vld [vmem:[#allocation7 + $0x18] sm:$0xf]
    %v247 = vld [vmem:[#allocation7 + $0x1c] sm:$0xf]
    %v248 = vld [vmem:[#allocation7 + $0x20] sm:$0xf]
    %v249 = vld [vmem:[#allocation7 + $0x24] sm:$0xf]
    %v250 = vld [vmem:[#allocation7 + $0x28] sm:$0xf]
    %v251 = vld [vmem:[#allocation7 + $0x2c] sm:$0xf]
    %v252 = vld [vmem:[#allocation7 + $0x30] sm:$0xf]
    %v253 = vld [vmem:[#allocation7 + $0x34] sm:$0xf]
    %v254 = vld [vmem:[#allocation7 + $0x38] sm:$0xf]
    %v255 = vld [vmem:[#allocation7 + $0x3c] sm:$0xf]
    %v256 = vld [vmem:[%s4] sm:$0x1]
    %v258 = vperm.slane %v256, 0
    %v276 = vunpack.c.l.b16 %v240
    %v277 = vunpack.c.l.b16 %v241
    %v278 = vunpack.c.l.b16 %v242
    %v279 = vunpack.c.l.b16 %v243
    %v280 = vunpack.c.l.b16 %v244
    %v281 = vunpack.c.l.b16 %v245
    %v282 = vunpack.c.l.b16 %v246
    %v283 = vunpack.c.l.b16 %v247
    %v284 = vunpack.c.l.b16 %v248
    %v285 = vunpack.c.l.b16 %v249
    %v286 = vunpack.c.l.b16 %v250
    %v287 = vunpack.c.l.b16 %v251
    %v288 = vunpack.c.l.b16 %v252
    %v289 = vunpack.c.l.b16 %v253
    %v290 = vunpack.c.l.b16 %v254
    %v291 = vunpack.c.l.b16 %v255
    %v292 = vpack.c.b16 %v277, %v276
    %v293 = vpack.c.b16 %v279, %v278
    %v294 = vpack.c.b16 %v281, %v280
    %v295 = vpack.c.b16 %v283, %v282
    %v296 = vpack.c.b16 %v285, %v284
    %v297 = vpack.c.b16 %v287, %v286
    %v298 = vpack.c.b16 %v289, %v288
    %v299 = vpack.c.b16 %v291, %v290
    %308 = vmatpush.bf16.msra.mxu0 %v299
    %309 = vmatpush.bf16.msra.mxu0 %v298
    %310 = vmatpush.bf16.msra.mxu0 %v297
    %311 = vmatpush.bf16.msra.mxu0 %v296
    %312 = vmatpush.bf16.msra.mxu0 %v295
    %313 = vmatpush.bf16.msra.mxu0 %v294
    %314 = vmatpush.bf16.msra.mxu0 %v293
    %315 = vmatpush.bf16.msra.mxu0 %v292
    %316 = vmatmul.bf16.gmra.mxu0 %v239
    %v317 = vpop.f32.mrf.mxu0
    %v318 = vadd.f32 %v258, %v317
    %v319 = vpop.f32.mrf.mxu0
    %v320 = vadd.f32 %v258, %v319
    %321 = vdwg.mxu0
    %v322 = vmax.f32 %v318, 0.0
    %v323 = vmax.f32 %v320, 0.0
    %v324 = vpack.c.bf16 %v323, %v322
    %v325 = vld [vmem:[#allocation8] sm:$0xf]
    %v326 = vld [vmem:[#allocation8 + $0x4] sm:$0xf]
    %v327 = vld [vmem:[#allocation8 + $0x8] sm:$0xf]
    %v328 = vld [vmem:[#allocation8 + $0xc] sm:$0xf]
    %v329 = vld [vmem:[#allocation8 + $0x10] sm:$0xf]
    %v330 = vld [vmem:[#allocation8 + $0x14] sm:$0xf]
    %v331 = vld [vmem:[#allocation8 + $0x18] sm:$0xf]
    %v332 = vld [vmem:[#allocation8 + $0x1c] sm:$0xf]
    %v333 = vld [vmem:[#allocation8 + $0x20] sm:$0xf]
    %v334 = vld [vmem:[#allocation8 + $0x24] sm:$0xf]
    %v335 = vld [vmem:[#allocation8 + $0x28] sm:$0xf]
    %v336 = vld [vmem:[#allocation8 + $0x2c] sm:$0xf]
    %v337 = vld [vmem:[#allocation8 + $0x30] sm:$0xf]
    %v338 = vld [vmem:[#allocation8 + $0x34] sm:$0xf]
    %v339 = vld [vmem:[#allocation8 + $0x38] sm:$0xf]
    %v340 = vld [vmem:[#allocation8 + $0x3c] sm:$0xf]
    %v341 = vld [vmem:[%s6] sm:$0x1]
    %v343 = vperm.slane %v341, 0
    %v361 = vunpack.c.l.b16 %v325
    %v362 = vunpack.c.l.b16 %v326
    %v363 = vunpack.c.l.b16 %v327
    %v364 = vunpack.c.l.b16 %v328
    %v365 = vunpack.c.l.b16 %v329
    %v366 = vunpack.c.l.b16 %v330
    %v367 = vunpack.c.l.b16 %v331
    %v368 = vunpack.c.l.b16 %v332
    %v369 = vunpack.c.l.b16 %v333
    %v370 = vunpack.c.l.b16 %v334
    %v371 = vunpack.c.l.b16 %v335
    %v372 = vunpack.c.l.b16 %v336
    %v373 = vunpack.c.l.b16 %v337
    %v374 = vunpack.c.l.b16 %v338
    %v375 = vunpack.c.l.b16 %v339
    %v376 = vunpack.c.l.b16 %v340
    %v377 = vpack.c.b16 %v362, %v361
    %v378 = vpack.c.b16 %v364, %v363
    %v379 = vpack.c.b16 %v366, %v365
    %v380 = vpack.c.b16 %v368, %v367
    %v381 = vpack.c.b16 %v370, %v369
    %v382 = vpack.c.b16 %v372, %v371
    %v383 = vpack.c.b16 %v374, %v373
    %v384 = vpack.c.b16 %v376, %v375
    %393 = vmatpush.bf16.msra.mxu0 %v384
    %394 = vmatpush.bf16.msra.mxu0 %v383
    %395 = vmatpush.bf16.msra.mxu0 %v382
    %396 = vmatpush.bf16.msra.mxu0 %v381
    %397 = vmatpush.bf16.msra.mxu0 %v380
    %398 = vmatpush.bf16.msra.mxu0 %v379
    %399 = vmatpush.bf16.msra.mxu0 %v378
    %400 = vmatpush.bf16.msra.mxu0 %v377
    %401 = vmatmul.bf16.gmra.mxu0 %v324
    %v402 = vpop.f32.mrf.mxu0
    %v403 = vadd.f32 %v343, %v402
    %v404 = vpop.f32.mrf.mxu0
    %v405 = vadd.f32 %v343, %v404
    %406 = vdwg.mxu0
    %v407 = vadd.f32 %v403, %v235
    %v408 = vadd.f32 %v405, %v237
    %v409 = vmax.f32 %v407, 0.0
    %v410 = vmax.f32 %v408, 0.0
    %v411 = vpack.c.bf16 %v410, %v409
    %v412 = vld [vmem:[#allocation10] sm:$0xf]
    %v413 = vld [vmem:[#allocation10 + $0x4] sm:$0xf]
    %v414 = vld [vmem:[#allocation10 + $0x8] sm:$0xf]
    %v415 = vld [vmem:[#allocation10 + $0xc] sm:$0xf]
    %v416 = vld [vmem:[#allocation10 + $0x10] sm:$0xf]
    %v417 = vld [vmem:[#allocation10 + $0x14] sm:$0xf]
    %v418 = vld [vmem:[#allocation10 + $0x18] sm:$0xf]
    %v419 = vld [vmem:[#allocation10 + $0x1c] sm:$0xf]
    %v420 = vld [vmem:[#allocation10 + $0x20] sm:$0xf]
    %v421 = vld [vmem:[#allocation10 + $0x24] sm:$0xf]
    %v422 = vld [vmem:[#allocation10 + $0x28] sm:$0xf]
    %v423 = vld [vmem:[#allocation10 + $0x2c] sm:$0xf]
    %v424 = vld [vmem:[#allocation10 + $0x30] sm:$0xf]
    %v425 = vld [vmem:[#allocation10 + $0x34] sm:$0xf]
    %v426 = vld [vmem:[#allocation10 + $0x38] sm:$0xf]
    %v427 = vld [vmem:[#allocation10 + $0x3c] sm:$0xf]
    %v428 = vld [vmem:[%s8] sm:$0x1]
    %v430 = vperm.slane %v428, 0
    %v448 = vunpack.c.l.b16 %v412
    %v449 = vunpack.c.l.b16 %v413
    %v450 = vunpack.c.l.b16 %v414
    %v451 = vunpack.c.l.b16 %v415
    %v452 = vunpack.c.l.b16 %v416
    %v453 = vunpack.c.l.b16 %v417
    %v454 = vunpack.c.l.b16 %v418
    %v455 = vunpack.c.l.b16 %v419
    %v456 = vunpack.c.l.b16 %v420
    %v457 = vunpack.c.l.b16 %v421
    %v458 = vunpack.c.l.b16 %v422
    %v459 = vunpack.c.l.b16 %v423
    %v460 = vunpack.c.l.b16 %v424
    %v461 = vunpack.c.l.b16 %v425
    %v462 = vunpack.c.l.b16 %v426
    %v463 = vunpack.c.l.b16 %v427
    %v464 = vpack.c.b16 %v449, %v448
    %v465 = vpack.c.b16 %v451, %v450
    %v466 = vpack.c.b16 %v453, %v452
    %v467 = vpack.c.b16 %v455, %v454
    %v468 = vpack.c.b16 %v457, %v456
    %v469 = vpack.c.b16 %v459, %v458
    %v470 = vpack.c.b16 %v461, %v460
    %v471 = vpack.c.b16 %v463, %v462
    %480 = vmatpush.bf16.msra.mxu0 %v471
    %481 = vmatpush.bf16.msra.mxu0 %v470
    %482 = vmatpush.bf16.msra.mxu0 %v469
    %483 = vmatpush.bf16.msra.mxu0 %v468
    %484 = vmatpush.bf16.msra.mxu0 %v467
    %485 = vmatpush.bf16.msra.mxu0 %v466
    %486 = vmatpush.bf16.msra.mxu0 %v465
    %487 = vmatpush.bf16.msra.mxu0 %v464
    %488 = vmatmul.bf16.gmra.mxu0 %v411
    %v489 = vpop.f32.mrf.mxu0
    %v490 = vadd.f32 %v430, %v489
    %v491 = vpop.f32.mrf.mxu0
    %v492 = vadd.f32 %v430, %v491
    %493 = vdwg.mxu0
    %v494 = vmax.f32 %v490, 0.0
    %v495 = vmax.f32 %v492, 0.0
    %v496 = vpack.c.bf16 %v495, %v494
    %v497 = vld [vmem:[#allocation11] sm:$0xf]
    %v498 = vld [vmem:[#allocation11 + $0x4] sm:$0xf]
    %v499 = vld [vmem:[#allocation11 + $0x8] sm:$0xf]
    %v500 = vld [vmem:[#allocation11 + $0xc] sm:$0xf]
    %v501 = vld [vmem:[#allocation11 + $0x10] sm:$0xf]
    %v502 = vld [vmem:[#allocation11 + $0x14] sm:$0xf]
    %v503 = vld [vmem:[#allocation11 + $0x18] sm:$0xf]
    %v504 = vld [vmem:[#allocation11 + $0x1c] sm:$0xf]
    %v505 = vld [vmem:[#allocation11 + $0x20] sm:$0xf]
    %v506 = vld [vmem:[#allocation11 + $0x24] sm:$0xf]
    %v507 = vld [vmem:[#allocation11 + $0x28] sm:$0xf]
    %v508 = vld [vmem:[#allocation11 + $0x2c] sm:$0xf]
    %v509 = vld [vmem:[#allocation11 + $0x30] sm:$0xf]
    %v510 = vld [vmem:[#allocation11 + $0x34] sm:$0xf]
    %v511 = vld [vmem:[#allocation11 + $0x38] sm:$0xf]
    %v512 = vld [vmem:[#allocation11 + $0x3c] sm:$0xf]
    %v513 = vld [vmem:[%s10] sm:$0x1]
    %v515 = vperm.slane %v513, 0
    %v533 = vunpack.c.l.b16 %v497
    %v534 = vunpack.c.l.b16 %v498
    %v535 = vunpack.c.l.b16 %v499
    %v536 = vunpack.c.l.b16 %v500
    %v537 = vunpack.c.l.b16 %v501
    %v538 = vunpack.c.l.b16 %v502
    %v539 = vunpack.c.l.b16 %v503
    %v540 = vunpack.c.l.b16 %v504
    %v541 = vunpack.c.l.b16 %v505
    %v542 = vunpack.c.l.b16 %v506
    %v543 = vunpack.c.l.b16 %v507
    %v544 = vunpack.c.l.b16 %v508
    %v545 = vunpack.c.l.b16 %v509
    %v546 = vunpack.c.l.b16 %v510
    %v547 = vunpack.c.l.b16 %v511
    %v548 = vunpack.c.l.b16 %v512
    %v549 = vpack.c.b16 %v534, %v533
    %v550 = vpack.c.b16 %v536, %v535
    %v551 = vpack.c.b16 %v538, %v537
    %v552 = vpack.c.b16 %v540, %v539
    %v553 = vpack.c.b16 %v542, %v541
    %v554 = vpack.c.b16 %v544, %v543
    %v555 = vpack.c.b16 %v546, %v545
    %v556 = vpack.c.b16 %v548, %v547
    %565 = vmatpush.bf16.msra.mxu0 %v556
    %566 = vmatpush.bf16.msra.mxu0 %v555
    %567 = vmatpush.bf16.msra.mxu0 %v554
    %568 = vmatpush.bf16.msra.mxu0 %v553
    %569 = vmatpush.bf16.msra.mxu0 %v552
    %570 = vmatpush.bf16.msra.mxu0 %v551
    %571 = vmatpush.bf16.msra.mxu0 %v550
    %572 = vmatpush.bf16.msra.mxu0 %v549
    %573 = vmatmul.bf16.gmra.mxu0 %v496
    %v574 = vpop.f32.mrf.mxu0
    %v575 = vadd.f32 %v515, %v574
    %v576 = vpop.f32.mrf.mxu0
    %v577 = vadd.f32 %v515, %v576
    %578 = vdwg.mxu0
    %v579 = vadd.f32 %v575, %v409
    %v580 = vadd.f32 %v577, %v410
    %v581 = vmax.f32 %v579, 0.0
    %v582 = vmax.f32 %v580, 0.0
    %v583 = vpack.c.bf16 %v582, %v581
    %v584 = vld [vmem:[#allocation13] sm:$0xf]
    %v585 = vld [vmem:[#allocation13 + $0x4] sm:$0xf]
    %v586 = vld [vmem:[#allocation13 + $0x8] sm:$0xf]
    %v587 = vld [vmem:[#allocation13 + $0xc] sm:$0xf]
    %v588 = vld [vmem:[#allocation13 + $0x10] sm:$0xf]
    %v589 = vld [vmem:[#allocation13 + $0x14] sm:$0xf]
    %v590 = vld [vmem:[#allocation13 + $0x18] sm:$0xf]
    %v591 = vld [vmem:[#allocation13 + $0x1c] sm:$0xf]
    %v592 = vld [vmem:[#allocation13 + $0x20] sm:$0xf]
    %v593 = vld [vmem:[#allocation13 + $0x24] sm:$0xf]
    %v594 = vld [vmem:[#allocation13 + $0x28] sm:$0xf]
    %v595 = vld [vmem:[#allocation13 + $0x2c] sm:$0xf]
    %v596 = vld [vmem:[#allocation13 + $0x30] sm:$0xf]
    %v597 = vld [vmem:[#allocation13 + $0x34] sm:$0xf]
    %v598 = vld [vmem:[#allocation13 + $0x38] sm:$0xf]
    %v599 = vld [vmem:[#allocation13 + $0x3c] sm:$0xf]
    %v600 = vld [vmem:[%s12] sm:$0x1]
    %v602 = vperm.slane %v600, 0
    %v620 = vunpack.c.l.b16 %v584
    %v621 = vunpack.c.l.b16 %v585
    %v622 = vunpack.c.l.b16 %v586
    %v623 = vunpack.c.l.b16 %v587
    %v624 = vunpack.c.l.b16 %v588
    %v625 = vunpack.c.l.b16 %v589
    %v626 = vunpack.c.l.b16 %v590
    %v627 = vunpack.c.l.b16 %v591
    %v628 = vunpack.c.l.b16 %v592
    %v629 = vunpack.c.l.b16 %v593
    %v630 = vunpack.c.l.b16 %v594
    %v631 = vunpack.c.l.b16 %v595
    %v632 = vunpack.c.l.b16 %v596
    %v633 = vunpack.c.l.b16 %v597
    %v634 = vunpack.c.l.b16 %v598
    %v635 = vunpack.c.l.b16 %v599
    %v636 = vpack.c.b16 %v621, %v620
    %v637 = vpack.c.b16 %v623, %v622
    %v638 = vpack.c.b16 %v625, %v624
    %v639 = vpack.c.b16 %v627, %v626
    %v640 = vpack.c.b16 %v629, %v628
    %v641 = vpack.c.b16 %v631, %v630
    %v642 = vpack.c.b16 %v633, %v632
    %v643 = vpack.c.b16 %v635, %v634
    %652 = vmatpush.bf16.msra.mxu0 %v643
    %653 = vmatpush.bf16.msra.mxu0 %v642
    %654 = vmatpush.bf16.msra.mxu0 %v641
    %655 = vmatpush.bf16.msra.mxu0 %v640
    %656 = vmatpush.bf16.msra.mxu0 %v639
    %657 = vmatpush.bf16.msra.mxu0 %v638
    %658 = vmatpush.bf16.msra.mxu0 %v637
    %659 = vmatpush.bf16.msra.mxu0 %v636
    %660 = vmatmul.bf16.gmra.mxu0 %v583
    %v661 = vpop.f32.mrf.mxu0
    %v662 = vadd.f32 %v602, %v661
    %v663 = vpop.f32.mrf.mxu0
    %v664 = vadd.f32 %v602, %v663
    %665 = vdwg.mxu0
    %666 = vst [vmem:[#allocation14] sm:$0xff] %v662
    %667 = vst [vmem:[#allocation14 + $0x8] sm:$0xff] %v664
    // Predicated region
    $region82: #{_res_block_pallas.1} parent=1 // pred_check
      _
    $region83: #{_res_block_pallas.1} parent=1 // pred_check_branch
      %669 = sbr.rel (0) target = $region85
    $region84: #{_res_block_pallas.1} parent=1 // pred_region
      %671 = vsyncadd [#allocation4], 0
      %s672 = sshll.u32 [#allocation14], 4
      %s673 = int_to_ptr.vmem [resolvable:$true] %s672
      %s674 = sshll.u32 %s13, 4
      %s675 = int_to_ptr.hbm [resolvable:$true] %s674
      %680 = dma.vmem_to_hbm [thread:$0]  %s673, 256, %s675, [#allocation4], 128, 128, 8
    $region85: #{_res_block_pallas.1} parent=1 // pred_fallthru
      _
    // Predicated region
    $region86: #{_res_block_pallas.1} parent=1 // pred_check
      _
    $region87: #{_res_block_pallas.1} parent=1 // pred_check_branch
      %682 = sbr.rel (0) target = $region89
    $region88: #{_res_block_pallas.1} parent=1 // pred_region
      %684 = dma.done [#allocation4], 256
    $region89: #{_res_block_pallas.1} parent=1 // pred_fallthru
      _
    %685 = vsyncpa [#allocation3], 1
    %686 = vsyncpa [#allocation6], 1
    %687 = vsyncpa [#allocation9], 1
    %688 = vsyncpa [#allocation12], 1
    %689 = vsyncpa [#allocation4], 1

</llo_original>
